<compile_context>
chip_gen: v7x
topology: tpu7x:2x2x1
jax: 0.10.0
libtpu: 0.0.40
codegen_flags: <defaults>
</compile_context>

<pallas_src>
import jax
import jax.numpy as jnp
from jax.experimental import pallas as pl
from jax.experimental.pallas import tpu as pltpu

# ---- model hyper-parameters (small, consistent with the module) ----
BATCH = 2
SEQ = 8
HIDDEN = 32
HEAD_NUM = 2
HEAD_DIM = HIDDEN // HEAD_NUM
INIT_RANGE = 0.02
SCALE = 1.0 / (HEAD_DIM ** 0.5)


def mhsa_kernel(x_ref, wqkv_ref, bqkv_ref, wc_ref, o_ref):
    """Whole (tiny) problem in one gridless invocation.

    x_ref    : (B*S, H)   bf16 flattened tokens
    wqkv_ref : (H, 3H)    bf16 pre-transposed [Wq.T | Wk.T | Wv.T]
    bqkv_ref : (1, 3H)    f32  [bq | bk | bv]
    wc_ref   : (H, H)     bf16 pre-transposed Wc.T
    o_ref    : (B*S, H)   f32
    """
    # Fused QKV projection: one bf16 MXU pass, f32 accumulation + f32 bias.
    qkv = (jnp.dot(x_ref[...], wqkv_ref[...], preferred_element_type=jnp.float32)
           + bqkv_ref[...])                                               # (BS, 3H) f32

    q = qkv[:, 0:HIDDEN]                                                  # (BS, H) f32
    k = qkv[:, HIDDEN:2 * HIDDEN]                                         # (BS, H) f32
    v = qkv[:, 2 * HIDDEN:3 * HIDDEN]                                     # (BS, H) f32

    # One transpose of the full K slab -> every per-(b,h) score matmul is a plain
    # (S,d)x(d,S) MXU op with no implicit operand transpose.
    k_t = jnp.transpose(k)                                                # (H, BS) f32

    q_bf = q.astype(jnp.bfloat16)
    kt_bf = k_t.astype(jnp.bfloat16)
    v_bf = v.astype(jnp.bfloat16)

    # ---- scores for all (batch, head) pairs, lane-packed into one (S, B*HEADS*S) tile
    score_tiles = []
    for b in range(BATCH):                                                # static unroll
        for h in range(HEAD_NUM):                                         # static unroll
            qh = q_bf[b * SEQ:(b + 1) * SEQ, h * HEAD_DIM:(h + 1) * HEAD_DIM]   # (S, d)
            kh_t = kt_bf[h * HEAD_DIM:(h + 1) * HEAD_DIM, b * SEQ:(b + 1) * SEQ]  # (d, S)
            score_tiles.append(
                jnp.dot(qh, kh_t, preferred_element_type=jnp.float32) * SCALE)   # (S, S)
    s_all = jnp.concatenate(score_tiles, axis=1)                          # (S, 4*S) f32

    # ---- ONE batched softmax over the QUERY axis (torch softmax dim=2), f32 math.
    m = jnp.max(s_all, axis=0, keepdims=True)                             # (1, 4*S)
    e = jnp.exp(s_all - m)
    inv = pl.reciprocal(jnp.sum(e, axis=0, keepdims=True), approx=True)   # EUP slot
    w_all = (e * inv).astype(jnp.bfloat16)                                # (S, 4*S)

    # ---- weights @ V per (b,h); fused per-batch output projection; in-place store.
    for b in range(BATCH):                                                # static unroll
        oh_tiles = []
        for h in range(HEAD_NUM):                                         # static unroll
            idx = b * HEAD_NUM + h
            wh = w_all[:, idx * SEQ:(idx + 1) * SEQ]                      # (S, S)  bf16
            vh = v_bf[b * SEQ:(b + 1) * SEQ, h * HEAD_DIM:(h + 1) * HEAD_DIM]   # (S, d)
            oh_tiles.append(jnp.dot(wh, vh, preferred_element_type=jnp.float32))
        oh = jnp.concatenate(oh_tiles, axis=1).astype(jnp.bfloat16)       # (S, H)
        y_b = jnp.dot(oh, wc_ref[...], preferred_element_type=jnp.float32)  # (S, H)
        o_ref[b * SEQ:(b + 1) * SEQ, :] = y_b.astype(o_ref.dtype)         # aligned 8-row store


@jax.jit
def mhsa_forward(x, wq, bq, wk, bk, wv, bv, wc):
    B, S, H = x.shape
    # Single explicit f32 -> bf16 cast of the activations (MXU-native input dtype).
    x2d = x.reshape(B * S, H).astype(jnp.bfloat16)
    # PyTorch nn.Linear weights are (out, in); pre-transpose + fuse once, outside the
    # kernel, and cast to bf16 (one-time cost).
    wqkv = jnp.concatenate([wq.T, wk.T, wv.T], axis=1).astype(jnp.bfloat16)   # (H, 3H)
    bqkv = jnp.concatenate([bq, bk, bv], axis=1)                              # (1, 3H) f32
    wc_t = wc.T.astype(jnp.bfloat16)                                          # (H, H)

    vmem = pltpu.MemorySpace.VMEM
    out2d = pl.pallas_call(
        mhsa_kernel,
        out_shape=jax.ShapeDtypeStruct((B * S, H), x.dtype),
        in_specs=[
            pl.BlockSpec(memory_space=vmem),    # x (flattened, bf16)
            pl.BlockSpec(memory_space=vmem),    # fused Wqkv (bf16)
            pl.BlockSpec(memory_space=vmem),    # fused bias (f32)
            pl.BlockSpec(memory_space=vmem),    # Wc.T (bf16)
        ],
        out_specs=pl.BlockSpec(memory_space=vmem),
    )(x2d, wqkv, bqkv, wc_t)
    return out2d.reshape(B, S, H)


def reference_forward(x, wq, bq, wk, bk, wv, bv, wc):
    """Plain-JAX (f32) mirror of the PyTorch forward (mask=None, dropout=0)."""
    xf = x.astype(jnp.float32)
    q = xf @ wq.T + bq
    k = xf @ wk.T + bk
    v = xf @ wv.T + bv
    # stack(chunk(., head_num, -1), 0) -> (heads, B, S, d)
    qs = jnp.stack(jnp.split(q, HEAD_NUM, axis=-1), 0)
    ks = jnp.stack(jnp.split(k, HEAD_NUM, axis=-1), 0)
    vs = jnp.stack(jnp.split(v, HEAD_NUM, axis=-1), 0)
    dots = jnp.einsum('hbqd,hbkd->hbqk', qs, ks) / jnp.sqrt(jnp.float32(HEAD_DIM))
    weights = jax.nn.softmax(dots, axis=2)            # dim=2 == query axis
    outs = jnp.einsum('hbqk,hbkd->hbqd', weights, vs)
    out = jnp.concatenate([outs[i] for i in range(HEAD_NUM)], axis=-1)    # (B,S,H)
    return (out @ wc.T).astype(x.dtype)


if __name__ == "__main__":
    key = jax.random.PRNGKey(0)
    kx, kq, kk, kv, kc, kbq, kbk, kbv = jax.random.split(key, 8)

    x = jax.random.normal(kx, (BATCH, SEQ, HIDDEN), dtype=jnp.float32)

    # Deterministic parameter init (matches module shapes; normal(0, 0.02) for weights).
    wq = INIT_RANGE * jax.random.normal(kq, (HIDDEN, HIDDEN), dtype=jnp.float32)
    wk = INIT_RANGE * jax.random.normal(kk, (HIDDEN, HIDDEN), dtype=jnp.float32)
    wv = INIT_RANGE * jax.random.normal(kv, (HIDDEN, HIDDEN), dtype=jnp.float32)
    wc = INIT_RANGE * jax.random.normal(kc, (HIDDEN, HIDDEN), dtype=jnp.float32)
    bound = 1.0 / (HIDDEN ** 0.5)                     # nn.Linear default bias init range
    bq = jax.random.uniform(kbq, (1, HIDDEN), jnp.float32, -bound, bound)
    bk = jax.random.uniform(kbk, (1, HIDDEN), jnp.float32, -bound, bound)
    bv = jax.random.uniform(kbv, (1, HIDDEN), jnp.float32, -bound, bound)

    out = jax.block_until_ready(mhsa_forward(x, wq, bq, wk, bk, wv, bv, wc))
    ref = reference_forward(x, wq, bq, wk, bk, wv, bv, wc)

    assert out.shape == (BATCH, SEQ, HIDDEN)
    # Tolerance covers bf16 MXU operands (f32 accumulation) and the EUP approximate
    # reciprocal in the softmax normalization; structural errors would be ~1e-1.
    assert jnp.allclose(out, ref, rtol=2e-2, atol=2e-3), "mismatch vs reference"

    # TODO(synk): mask branch (bmm-built attention mask + re-masked softmax) not implemented;
    # forward is reproduced for the mask=None path with dropout p=0 (identity).
    print("KERNEL_OK")
</pallas_src>

<mosaic_0001>
module attributes {stable_mosaic.version = 11 : i64} {
  func.func @mhsa_kernel(%arg0: memref<16x32xbf16, #tpu.memory_space<vmem>>, %arg1: memref<32x96xbf16, #tpu.memory_space<vmem>>, %arg2: memref<1x96xf32, #tpu.memory_space<vmem>>, %arg3: memref<32x32xbf16, #tpu.memory_space<vmem>>, %arg4: memref<16x32xf32, #tpu.memory_space<vmem>>) attributes {dimension_semantics = [], scalar_prefetch = 0 : i64, scratch_operands = 0 : i64, tpu.core_type = #tpu.core_type<tc>} {
    %c0 = arith.constant 0 : index
    %c0_0 = arith.constant 0 : index
    %0 = vector.load %arg0[%c0, %c0_0] : memref<16x32xbf16, #tpu.memory_space<vmem>>, vector<16x32xbf16>
    %c0_1 = arith.constant 0 : index
    %c0_2 = arith.constant 0 : index
    %1 = vector.load %arg1[%c0_1, %c0_2] : memref<32x96xbf16, #tpu.memory_space<vmem>>, vector<32x96xbf16>
    %cst = arith.constant dense<0.000000e+00> : vector<16x96xf32>
    %2 = tpu.matmul %0, %1, %cst {dimension_numbers = #tpu.dot_dimension_numbers<[1], [0], [0], [1], [0, 0, 1, 1], [], []>} : vector<16x32xbf16>, vector<32x96xbf16>, vector<16x96xf32> -> vector<16x96xf32>
    %c0_3 = arith.constant 0 : index
    %c0_4 = arith.constant 0 : index
    %3 = vector.load %arg2[%c0_3, %c0_4] : memref<1x96xf32, #tpu.memory_space<vmem>>, vector<1x96xf32>
    %4 = vector.broadcast %3 : vector<1x96xf32> to vector<16x96xf32>
    %5 = arith.addf %2, %4 : vector<16x96xf32>
    %6 = vector.extract_strided_slice %5 {offsets = [0, 0], sizes = [16, 32], strides = [1, 1]} : vector<16x96xf32> to vector<16x32xf32>
    %7 = vector.extract_strided_slice %5 {offsets = [0, 32], sizes = [16, 32], strides = [1, 1]} : vector<16x96xf32> to vector<16x32xf32>
    %8 = vector.extract_strided_slice %5 {offsets = [0, 64], sizes = [16, 32], strides = [1, 1]} : vector<16x96xf32> to vector<16x32xf32>
    %9 = tpu.transpose %7, [1, 0] : vector<16x32xf32> -> vector<32x16xf32>
    %10 = arith.truncf %6 : vector<16x32xf32> to vector<16x32xbf16>
    %11 = arith.truncf %9 : vector<32x16xf32> to vector<32x16xbf16>
    %12 = arith.truncf %8 : vector<16x32xf32> to vector<16x32xbf16>
    %13 = vector.extract_strided_slice %10 {offsets = [0, 0], sizes = [8, 16], strides = [1, 1]} : vector<16x32xbf16> to vector<8x16xbf16>
    %14 = vector.extract_strided_slice %11 {offsets = [0, 0], sizes = [16, 8], strides = [1, 1]} : vector<32x16xbf16> to vector<16x8xbf16>
    %cst_5 = arith.constant dense<0.000000e+00> : vector<8x8xf32>
    %15 = tpu.matmul %13, %14, %cst_5 {dimension_numbers = #tpu.dot_dimension_numbers<[1], [0], [0], [1], [0, 0, 1, 1], [], []>} : vector<8x16xbf16>, vector<16x8xbf16>, vector<8x8xf32> -> vector<8x8xf32>
    %cst_6 = arith.constant 2.500000e-01 : f32
    %16 = vector.broadcast %cst_6 : f32 to vector<8x8xf32>
    %17 = arith.mulf %15, %16 : vector<8x8xf32>
    %18 = vector.extract_strided_slice %10 {offsets = [0, 16], sizes = [8, 16], strides = [1, 1]} : vector<16x32xbf16> to vector<8x16xbf16>
    %19 = vector.extract_strided_slice %11 {offsets = [16, 0], sizes = [16, 8], strides = [1, 1]} : vector<32x16xbf16> to vector<16x8xbf16>
    %cst_7 = arith.constant dense<0.000000e+00> : vector<8x8xf32>
    %20 = tpu.matmul %18, %19, %cst_7 {dimension_numbers = #tpu.dot_dimension_numbers<[1], [0], [0], [1], [0, 0, 1, 1], [], []>} : vector<8x16xbf16>, vector<16x8xbf16>, vector<8x8xf32> -> vector<8x8xf32>
    %cst_8 = arith.constant 2.500000e-01 : f32
    %21 = vector.broadcast %cst_8 : f32 to vector<8x8xf32>
    %22 = arith.mulf %20, %21 : vector<8x8xf32>
    %23 = vector.extract_strided_slice %10 {offsets = [8, 0], sizes = [8, 16], strides = [1, 1]} : vector<16x32xbf16> to vector<8x16xbf16>
    %24 = vector.extract_strided_slice %11 {offsets = [0, 8], sizes = [16, 8], strides = [1, 1]} : vector<32x16xbf16> to vector<16x8xbf16>
    %cst_9 = arith.constant dense<0.000000e+00> : vector<8x8xf32>
    %25 = tpu.matmul %23, %24, %cst_9 {dimension_numbers = #tpu.dot_dimension_numbers<[1], [0], [0], [1], [0, 0, 1, 1], [], []>} : vector<8x16xbf16>, vector<16x8xbf16>, vector<8x8xf32> -> vector<8x8xf32>
    %cst_10 = arith.constant 2.500000e-01 : f32
    %26 = vector.broadcast %cst_10 : f32 to vector<8x8xf32>
    %27 = arith.mulf %25, %26 : vector<8x8xf32>
    %28 = vector.extract_strided_slice %10 {offsets = [8, 16], sizes = [8, 16], strides = [1, 1]} : vector<16x32xbf16> to vector<8x16xbf16>
    %29 = vector.extract_strided_slice %11 {offsets = [16, 8], sizes = [16, 8], strides = [1, 1]} : vector<32x16xbf16> to vector<16x8xbf16>
    %cst_11 = arith.constant dense<0.000000e+00> : vector<8x8xf32>
    %30 = tpu.matmul %28, %29, %cst_11 {dimension_numbers = #tpu.dot_dimension_numbers<[1], [0], [0], [1], [0, 0, 1, 1], [], []>} : vector<8x16xbf16>, vector<16x8xbf16>, vector<8x8xf32> -> vector<8x8xf32>
    %cst_12 = arith.constant 2.500000e-01 : f32
    %31 = vector.broadcast %cst_12 : f32 to vector<8x8xf32>
    %32 = arith.mulf %30, %31 : vector<8x8xf32>
    %33 = tpu.concatenate %17, %22, %27, %32 in 1 : vector<8x8xf32>, vector<8x8xf32>, vector<8x8xf32>, vector<8x8xf32> -> vector<8x32xf32>
    %cst_13 = arith.constant dense<0xFF800000> : vector<32xf32>
    %34 = vector.multi_reduction <maximumf>, %33, %cst_13 [0] : vector<8x32xf32> to vector<32xf32>
    %35 = vector.shape_cast %34 : vector<32xf32> to vector<1x32xf32>
    %36 = vector.broadcast %35 : vector<1x32xf32> to vector<8x32xf32>
    %37 = arith.subf %33, %36 : vector<8x32xf32>
    %38 = math.exp %37 : vector<8x32xf32>
    %cst_14 = arith.constant dense<0.000000e+00> : vector<32xf32>
    %39 = vector.multi_reduction <add>, %38, %cst_14 [0] : vector<8x32xf32> to vector<32xf32>
    %40 = vector.shape_cast %39 : vector<32xf32> to vector<1x32xf32>
    %41 = tpu.reciprocal %40 {approx = true} : vector<1x32xf32> -> vector<1x32xf32>
    %42 = vector.broadcast %41 : vector<1x32xf32> to vector<8x32xf32>
    %43 = arith.mulf %38, %42 : vector<8x32xf32>
    %44 = arith.truncf %43 : vector<8x32xf32> to vector<8x32xbf16>
    %45 = vector.extract_strided_slice %44 {offsets = [0, 0], sizes = [8, 8], strides = [1, 1]} : vector<8x32xbf16> to vector<8x8xbf16>
    %46 = vector.extract_strided_slice %12 {offsets = [0, 0], sizes = [8, 16], strides = [1, 1]} : vector<16x32xbf16> to vector<8x16xbf16>
    %cst_15 = arith.constant dense<0.000000e+00> : vector<8x16xf32>
    %47 = tpu.matmul %45, %46, %cst_15 {dimension_numbers = #tpu.dot_dimension_numbers<[1], [0], [0], [1], [0, 0, 1, 1], [], []>} : vector<8x8xbf16>, vector<8x16xbf16>, vector<8x16xf32> -> vector<8x16xf32>
    %48 = vector.extract_strided_slice %44 {offsets = [0, 8], sizes = [8, 8], strides = [1, 1]} : vector<8x32xbf16> to vector<8x8xbf16>
    %49 = vector.extract_strided_slice %12 {offsets = [0, 16], sizes = [8, 16], strides = [1, 1]} : vector<16x32xbf16> to vector<8x16xbf16>
    %cst_16 = arith.constant dense<0.000000e+00> : vector<8x16xf32>
    %50 = tpu.matmul %48, %49, %cst_16 {dimension_numbers = #tpu.dot_dimension_numbers<[1], [0], [0], [1], [0, 0, 1, 1], [], []>} : vector<8x8xbf16>, vector<8x16xbf16>, vector<8x16xf32> -> vector<8x16xf32>
    %51 = tpu.concatenate %47, %50 in 1 : vector<8x16xf32>, vector<8x16xf32> -> vector<8x32xf32>
    %52 = arith.truncf %51 : vector<8x32xf32> to vector<8x32xbf16>
    %c0_17 = arith.constant 0 : index
    %c0_18 = arith.constant 0 : index
    %53 = vector.load %arg3[%c0_17, %c0_18] : memref<32x32xbf16, #tpu.memory_space<vmem>>, vector<32x32xbf16>
    %cst_19 = arith.constant dense<0.000000e+00> : vector<8x32xf32>
    %54 = tpu.matmul %52, %53, %cst_19 {dimension_numbers = #tpu.dot_dimension_numbers<[1], [0], [0], [1], [0, 0, 1, 1], [], []>} : vector<8x32xbf16>, vector<32x32xbf16>, vector<8x32xf32> -> vector<8x32xf32>
    %c0_20 = arith.constant 0 : index
    %c0_21 = arith.constant 0 : index
    %55 = vector.load %arg4[%c0_20, %c0_21] : memref<16x32xf32, #tpu.memory_space<vmem>>, vector<8x32xf32>
    tpu.vector_store %arg4[%c0_20, %c0_21], %54 {strides = array<i32>} : memref<16x32xf32, #tpu.memory_space<vmem>>, vector<8x32xf32>,
    %56 = vector.extract_strided_slice %44 {offsets = [0, 16], sizes = [8, 8], strides = [1, 1]} : vector<8x32xbf16> to vector<8x8xbf16>
    %57 = vector.extract_strided_slice %12 {offsets = [8, 0], sizes = [8, 16], strides = [1, 1]} : vector<16x32xbf16> to vector<8x16xbf16>
    %cst_22 = arith.constant dense<0.000000e+00> : vector<8x16xf32>
    %58 = tpu.matmul %56, %57, %cst_22 {dimension_numbers = #tpu.dot_dimension_numbers<[1], [0], [0], [1], [0, 0, 1, 1], [], []>} : vector<8x8xbf16>, vector<8x16xbf16>, vector<8x16xf32> -> vector<8x16xf32>
    %59 = vector.extract_strided_slice %44 {offsets = [0, 24], sizes = [8, 8], strides = [1, 1]} : vector<8x32xbf16> to vector<8x8xbf16>
    %60 = vector.extract_strided_slice %12 {offsets = [8, 16], sizes = [8, 16], strides = [1, 1]} : vector<16x32xbf16> to vector<8x16xbf16>
    %cst_23 = arith.constant dense<0.000000e+00> : vector<8x16xf32>
    %61 = tpu.matmul %59, %60, %cst_23 {dimension_numbers = #tpu.dot_dimension_numbers<[1], [0], [0], [1], [0, 0, 1, 1], [], []>} : vector<8x8xbf16>, vector<8x16xbf16>, vector<8x16xf32> -> vector<8x16xf32>
    %62 = tpu.concatenate %58, %61 in 1 : vector<8x16xf32>, vector<8x16xf32> -> vector<8x32xf32>
    %63 = arith.truncf %62 : vector<8x32xf32> to vector<8x32xbf16>
    %c0_24 = arith.constant 0 : index
    %c0_25 = arith.constant 0 : index
    %64 = vector.load %arg3[%c0_24, %c0_25] : memref<32x32xbf16, #tpu.memory_space<vmem>>, vector<32x32xbf16>
    %cst_26 = arith.constant dense<0.000000e+00> : vector<8x32xf32>
    %65 = tpu.matmul %63, %64, %cst_26 {dimension_numbers = #tpu.dot_dimension_numbers<[1], [0], [0], [1], [0, 0, 1, 1], [], []>} : vector<8x32xbf16>, vector<32x32xbf16>, vector<8x32xf32> -> vector<8x32xf32>
    %c8 = arith.constant 8 : index
    %c0_27 = arith.constant 0 : index
    %66 = vector.load %arg4[%c8, %c0_27] : memref<16x32xf32, #tpu.memory_space<vmem>>, vector<8x32xf32>
    tpu.vector_store %arg4[%c8, %c0_27], %65 {strides = array<i32>} : memref<16x32xf32, #tpu.memory_space<vmem>>, vector<8x32xf32>,
    return
  }
}

</mosaic_0001>

<llo_original>
// kernel: mhsa_forward.1
$region0: #{mhsa_forward.1}
  #allocation0 [shape = 'u32[]', space=smem, size = 0x4, offset = 0x4, fixed_abs, tag = 'smem constant byte address 0x4 - core index']
  #allocation1 [shape = 'u32[144,128]{1,0:T(1,128)}', space=vmem, size = 0x12000, scoped, tag = 'internal scratch']
  %s0 = inlined_call_operand.vmem [shape: bf16[16,32], index: 0, kind: input, shape index: {}]
  %s1 = inlined_call_operand.vmem [shape: bf16[32,96], index: 1, kind: input, shape index: {}]
  %s2 = inlined_call_operand.vmem [shape: f32[1,96], index: 2, kind: input, shape index: {}]
  %s3 = inlined_call_operand.vmem [shape: bf16[32,32], index: 3, kind: input, shape index: {}]
  %s4 = inlined_call_operand.hbm [shape: f32[16,32], index: 4, kind: output, shape index: {}]
  %s5 = sld [smem:[#allocation0]]
  $region26: #{mhsa_forward.1} parent=0
    _
  %s7 = ssub.s32 1, %s5
  %s8 = scalar_select 0, %s7, %s5
  $region1: #{mhsa_forward.1} parent=0
    #allocation2 [shape = 'u8[8192]{0}', space=vmem, size = 0x2000, scoped, tag = 'output window, operand 0, single buffered']
    #allocation3 [shape = 's32[1]{0}', space=sflag, size = 0x4, scoped, tag = 'scoped memory for mhsa_forward.1']
    %9 = vsyncpa [#allocation3], 0
    // Predicated region
    $region2: #{mhsa_forward.1} parent=1 // pred_check
      _
    $region3: #{mhsa_forward.1} parent=1 // pred_check_branch
      %11 = sbr.rel (0) target = $region5
    $region4: #{mhsa_forward.1} parent=1 // pred_region
      _
    $region5: #{mhsa_forward.1} parent=1 // pred_fallthru
      _
    // Predicated region
    $region6: #{mhsa_forward.1} parent=1 // pred_check
      _
    $region7: #{mhsa_forward.1} parent=1 // pred_check_branch
      %13 = sbr.rel (0) target = $region9
    $region8: #{mhsa_forward.1} parent=1 // pred_region
      _
    $region9: #{mhsa_forward.1} parent=1 // pred_fallthru
      _
    // Predicated region
    $region10: #{mhsa_forward.1} parent=1 // pred_check
      _
    $region11: #{mhsa_forward.1} parent=1 // pred_check_branch
      %15 = sbr.rel (0) target = $region13
    $region12: #{mhsa_forward.1} parent=1 // pred_region
      _
    $region13: #{mhsa_forward.1} parent=1 // pred_fallthru
      _
    // Predicated region
    $region14: #{mhsa_forward.1} parent=1 // pred_check
      _
    $region15: #{mhsa_forward.1} parent=1 // pred_check_branch
      %17 = sbr.rel (0) target = $region17
    $region16: #{mhsa_forward.1} parent=1 // pred_region
      _
    $region17: #{mhsa_forward.1} parent=1 // pred_fallthru
      _
    %v19 = vld [vmem:[%s0] sm:$0xf]
    %v20 = vld [vmem:[%s0 + $0x4] sm:$0xf]
    %v21 = vld [vmem:[%s1] sm:$0xf]
    %v22 = vld [vmem:[%s1 + $0x4] sm:$0xf]
    %v23 = vld [vmem:[%s1 + $0x8] sm:$0xf]
    %v24 = vld [vmem:[%s1 + $0xc] sm:$0xf]
    %v25 = vld [vmem:[%s2] sm:$0x1]
    %v27 = vlaneseq
    %v28 = vshrl.u32 %v27, 7
    %v29 = vsub.s32 0, %v28
    %v30 = vrot.slane %v25, %v29
    %v34 = vunpack.c.l.b16 %v19
    %v35 = vunpack.c.l.b16 %v20
    %v36 = vpack.c.b16 %v35, %v34
    %v41 = vunpack.c.l.b16 %v21
    %v42 = vunpack.c.l.b16 %v22
    %v43 = vunpack.c.l.b16 %v23
    %v44 = vunpack.c.l.b16 %v24
    %v45 = vpack.c.b16 %v42, %v41
    %v46 = vpack.c.b16 %v44, %v43
    %vm49 = vcmask 261120
    %v51 = vsel %vm49, %v36, 0
    %53 = vmatprep.subr.bf16.mxu0 0
    %54 = vmatpush1.bf16.msra.mxu0 %v45
    %55 = vmatprep.subr.bf16.mxu0 0
    %56 = vmatpush1.bf16.msra.mxu0 %v46
    %57 = vmatprep.subr.bf16.mxu0 0
    %58 = vmatpush1.bf16.msra.mxu0 0
    %59 = vmatprep.subr.bf16.mxu0 0
    %60 = vmatpush1.bf16.msra.mxu0 0
    %61 = vmatprep.subr.bf16.mxu0 0
    %62 = vmatpush1.bf16.msra.mxu0 0
    %63 = vmatprep.subr.bf16.mxu0 0
    %64 = vmatpush1.bf16.msra.mxu0 0
    %65 = vmatprep.subr.bf16.mxu0 0
    %66 = vmatpush1.bf16.msra.mxu0 0
    %67 = vmatprep.subr.bf16.mxu0 0
    %68 = vmatpush1.bf16.msra.mxu0 0
    %69 = vmatprep.subr.bf16.mxu0 0
    %70 = vmatpush1.bf16.msra.mxu0 0
    %71 = vmatprep.subr.bf16.mxu0 0
    %72 = vmatpush1.bf16.msra.mxu0 0
    %73 = vmatprep.subr.bf16.mxu0 0
    %74 = vmatpush1.bf16.msra.mxu0 0
    %75 = vmatprep.subr.bf16.mxu0 0
    %76 = vmatpush1.bf16.msra.mxu0 0
    %77 = vmatprep.subr.bf16.mxu0 0
    %78 = vmatpush1.bf16.msra.mxu0 0
    %79 = vmatprep.subr.bf16.mxu0 0
    %80 = vmatpush1.bf16.msra.mxu0 0
    %81 = vmatprep.subr.bf16.mxu0 0
    %82 = vmatpush1.bf16.msra.mxu0 0
    %83 = vmatprep.subr.bf16.mxu0 0
    %84 = vmatpush1.bf16.msra.mxu0 0
    %85 = vmatprep.mubr.bf16.mxu0 0
    %86 = vmatmul.mubr.bf16.gmra.mrb[0].mxu0 %v51
    %v87 = vpop.f32.mrb[0].mxu0
    %v88 = vadd.f32 %v30, %v87
    %v89 = vpop.f32.mrb[0].mxu0
    %v90 = vpop.f32.mrb[0].mxu0
    %v91 = vadd.f32 %v30, %v90
    %v92 = vpop.f32.mrb[0].mxu0
    %93 = vdwg.mxu0
    %96 = vrot.lane.b32.xlu0 %v88, 96
    %v97 = vpop.permute.xlu0 %96
    %98 = vrot.lane.b32.xlu0 %v91, 96
    %v99 = vpop.permute.xlu0 %98
    %102 = vxpose.xlu0.b32.start [1/16] %v97, 128
    %103 = vxpose.xlu0.b32.cont [2/16] %v99, 128
    %104 = vxpose.xlu0.b32.cont [3/16] 0.0, 128
    %105 = vxpose.xlu0.b32.cont [4/16] 0.0, 128
    %106 = vxpose.xlu0.b32.cont [5/16] 0.0, 128
    %107 = vxpose.xlu0.b32.cont [6/16] 0.0, 128
    %108 = vxpose.xlu0.b32.cont [7/16] 0.0, 128
    %109 = vxpose.xlu0.b32.cont [8/16] 0.0, 128
    %110 = vxpose.xlu0.b32.cont [9/16] 0.0, 128
    %111 = vxpose.xlu0.b32.cont [10/16] 0.0, 128
    %112 = vxpose.xlu0.b32.cont [11/16] 0.0, 128
    %113 = vxpose.xlu0.b32.cont [12/16] 0.0, 128
    %114 = vxpose.xlu0.b32.cont [13/16] 0.0, 128
    %115 = vxpose.xlu0.b32.cont [14/16] 0.0, 128
    %116 = vxpose.xlu0.b32.cont [15/16] 0.0, 128
    %117 = vxpose.xlu0.b32.end [16/16] 0.0, 128
    %v118 = vpop.trf.xlu0
    %v119 = vpop.trf.xlu0
    %v120 = vpop.trf.xlu0
    %v121 = vpop.trf.xlu0
    %v122 = vpop.trf.xlu0
    %v123 = vpop.trf.xlu0
    %v124 = vpop.trf.xlu0
    %v125 = vpop.trf.xlu0
    %v126 = vpop.trf.xlu0
    %v127 = vpop.trf.xlu0
    %v128 = vpop.trf.xlu0
    %v129 = vpop.trf.xlu0
    %v130 = vpop.trf.xlu0
    %v131 = vpop.trf.xlu0
    %v132 = vpop.trf.xlu0
    %v133 = vpop.trf.xlu0
    %v134 = vpack.c.bf16 %v91, %v88
    %v135 = vpack.c.bf16 %v119, %v118
    %v136 = vpack.c.bf16 %v121, %v120
    %vm137 = vcmask 130048
    %v139 = vsel %vm137, %v134, 0
    %141 = vmatprep.subr.bf16.mxu0 0
    %142 = vmatpush1.bf16.msra.mxu0 %v135
    %143 = vmatprep.subr.bf16.mxu0 0
    %144 = vmatpush1.bf16.msra.mxu0 0
    %145 = vmatprep.subr.bf16.mxu0 0
    %146 = vmatpush1.bf16.msra.mxu0 0
    %147 = vmatprep.subr.bf16.mxu0 0
    %148 = vmatpush1.bf16.msra.mxu0 0
    %149 = vmatprep.subr.bf16.mxu0 0
    %150 = vmatpush1.bf16.msra.mxu0 0
    %151 = vmatprep.subr.bf16.mxu0 0
    %152 = vmatpush1.bf16.msra.mxu0 0
    %153 = vmatprep.subr.bf16.mxu0 0
    %154 = vmatpush1.bf16.msra.mxu0 0
    %155 = vmatprep.subr.bf16.mxu0 0
    %156 = vmatpush1.bf16.msra.mxu0 0
    %157 = vmatprep.subr.bf16.mxu0 0
    %158 = vmatpush1.bf16.msra.mxu0 0
    %159 = vmatprep.subr.bf16.mxu0 0
    %160 = vmatpush1.bf16.msra.mxu0 0
    %161 = vmatprep.subr.bf16.mxu0 0
    %162 = vmatpush1.bf16.msra.mxu0 0
    %163 = vmatprep.subr.bf16.mxu0 0
    %164 = vmatpush1.bf16.msra.mxu0 0
    %165 = vmatprep.subr.bf16.mxu0 0
    %166 = vmatpush1.bf16.msra.mxu0 0
    %167 = vmatprep.subr.bf16.mxu0 0
    %168 = vmatpush1.bf16.msra.mxu0 0
    %169 = vmatprep.subr.bf16.mxu0 0
    %170 = vmatpush1.bf16.msra.mxu0 0
    %171 = vmatprep.subr.bf16.mxu0 0
    %172 = vmatpush1.bf16.msra.mxu0 0
    %173 = vmatprep.mubr.bf16.mxu0 0
    %174 = vmatmul.mubr.bf16.gmra.mrb[0].mxu0 %v139
    %v175 = vpop.f32.mrb[0].mxu0
    %v176 = vadd.f32 0.0, %v175
    %v177 = vpop.f32.mrb[0].mxu0
    %v178 = vpop.f32.mrb[0].mxu0
    %v179 = vpop.f32.mrb[0].mxu0
    %180 = vdwg.mxu0
    %v181 = vmul.f32 %v176, 0.25
    %183 = vrot.lane.b32.xlu0 %v134, 112
    %v184 = vpop.permute.xlu0 %183
    %v186 = vsel %vm137, %v184, 0
    %188 = vmatprep.subr.bf16.mxu0 0
    %189 = vmatpush1.bf16.msra.mxu0 %v136
    %190 = vmatprep.subr.bf16.mxu0 0
    %191 = vmatpush1.bf16.msra.mxu0 0
    %192 = vmatprep.subr.bf16.mxu0 0
    %193 = vmatpush1.bf16.msra.mxu0 0
    %194 = vmatprep.subr.bf16.mxu0 0
    %195 = vmatpush1.bf16.msra.mxu0 0
    %196 = vmatprep.subr.bf16.mxu0 0
    %197 = vmatpush1.bf16.msra.mxu0 0
    %198 = vmatprep.subr.bf16.mxu0 0
    %199 = vmatpush1.bf16.msra.mxu0 0
    %200 = vmatprep.subr.bf16.mxu0 0
    %201 = vmatpush1.bf16.msra.mxu0 0
    %202 = vmatprep.subr.bf16.mxu0 0
    %203 = vmatpush1.bf16.msra.mxu0 0
    %204 = vmatprep.subr.bf16.mxu0 0
    %205 = vmatpush1.bf16.msra.mxu0 0
    %206 = vmatprep.subr.bf16.mxu0 0
    %207 = vmatpush1.bf16.msra.mxu0 0
    %208 = vmatprep.subr.bf16.mxu0 0
    %209 = vmatpush1.bf16.msra.mxu0 0
    %210 = vmatprep.subr.bf16.mxu0 0
    %211 = vmatpush1.bf16.msra.mxu0 0
    %212 = vmatprep.subr.bf16.mxu0 0
    %213 = vmatpush1.bf16.msra.mxu0 0
    %214 = vmatprep.subr.bf16.mxu0 0
    %215 = vmatpush1.bf16.msra.mxu0 0
    %216 = vmatprep.subr.bf16.mxu0 0
    %217 = vmatpush1.bf16.msra.mxu0 0
    %218 = vmatprep.subr.bf16.mxu0 0
    %219 = vmatpush1.bf16.msra.mxu0 0
    %220 = vmatprep.mubr.bf16.mxu0 0
    %221 = vmatmul.mubr.bf16.gmra.mrb[0].mxu0 %v186
    %v222 = vpop.f32.mrb[0].mxu0
    %v223 = vadd.f32 0.0, %v222
    %v224 = vpop.f32.mrb[0].mxu0
    %v225 = vpop.f32.mrb[0].mxu0
    %v226 = vpop.f32.mrb[0].mxu0
    %227 = vdwg.mxu0
    %v228 = vmul.f32 %v223, 0.25
    %v229 = vrot.slane %v134, 4
    %231 = vrot.lane.b32.xlu0 %v135, 120
    %v232 = vpop.permute.xlu0 %231
    %v235 = vsel %vm137, %v229, 0
    %237 = vmatprep.subr.bf16.mxu0 0
    %238 = vmatpush1.bf16.msra.mxu0 %v232
    %239 = vmatprep.subr.bf16.mxu0 0
    %240 = vmatpush1.bf16.msra.mxu0 0
    %241 = vmatprep.subr.bf16.mxu0 0
    %242 = vmatpush1.bf16.msra.mxu0 0
    %243 = vmatprep.subr.bf16.mxu0 0
    %244 = vmatpush1.bf16.msra.mxu0 0
    %245 = vmatprep.subr.bf16.mxu0 0
    %246 = vmatpush1.bf16.msra.mxu0 0
    %247 = vmatprep.subr.bf16.mxu0 0
    %248 = vmatpush1.bf16.msra.mxu0 0
    %249 = vmatprep.subr.bf16.mxu0 0
    %250 = vmatpush1.bf16.msra.mxu0 0
    %251 = vmatprep.subr.bf16.mxu0 0
    %252 = vmatpush1.bf16.msra.mxu0 0
    %253 = vmatprep.subr.bf16.mxu0 0
    %254 = vmatpush1.bf16.msra.mxu0 0
    %255 = vmatprep.subr.bf16.mxu0 0
    %256 = vmatpush1.bf16.msra.mxu0 0
    %257 = vmatprep.subr.bf16.mxu0 0
    %258 = vmatpush1.bf16.msra.mxu0 0
    %259 = vmatprep.subr.bf16.mxu0 0
    %260 = vmatpush1.bf16.msra.mxu0 0
    %261 = vmatprep.subr.bf16.mxu0 0
    %262 = vmatpush1.bf16.msra.mxu0 0
    %263 = vmatprep.subr.bf16.mxu0 0
    %264 = vmatpush1.bf16.msra.mxu0 0
    %265 = vmatprep.subr.bf16.mxu0 0
    %266 = vmatpush1.bf16.msra.mxu0 0
    %267 = vmatprep.subr.bf16.mxu0 0
    %268 = vmatpush1.bf16.msra.mxu0 0
    %269 = vmatprep.mubr.bf16.mxu0 0
    %270 = vmatmul.mubr.bf16.gmra.mrb[0].mxu0 %v235
    %v271 = vpop.f32.mrb[0].mxu0
    %v272 = vadd.f32 0.0, %v271
    %v273 = vpop.f32.mrb[0].mxu0
    %v274 = vpop.f32.mrb[0].mxu0
    %v275 = vpop.f32.mrb[0].mxu0
    %276 = vdwg.mxu0
    %v277 = vmul.f32 %v272, 0.25
    %278 = vrot.lane.b32.xlu0 %v229, 112
    %v279 = vpop.permute.xlu0 %278
    %281 = vrot.lane.b32.xlu0 %v136, 120
    %v282 = vpop.permute.xlu0 %281
    %v285 = vsel %vm137, %v279, 0
    %287 = vmatprep.subr.bf16.mxu0 0
    %288 = vmatpush1.bf16.msra.mxu0 %v282
    %289 = vmatprep.subr.bf16.mxu0 0
    %290 = vmatpush1.bf16.msra.mxu0 0
    %291 = vmatprep.subr.bf16.mxu0 0
    %292 = vmatpush1.bf16.msra.mxu0 0
    %293 = vmatprep.subr.bf16.mxu0 0
    %294 = vmatpush1.bf16.msra.mxu0 0
    %295 = vmatprep.subr.bf16.mxu0 0
    %296 = vmatpush1.bf16.msra.mxu0 0
    %297 = vmatprep.subr.bf16.mxu0 0
    %298 = vmatpush1.bf16.msra.mxu0 0
    %299 = vmatprep.subr.bf16.mxu0 0
    %300 = vmatpush1.bf16.msra.mxu0 0
    %301 = vmatprep.subr.bf16.mxu0 0
    %302 = vmatpush1.bf16.msra.mxu0 0
    %303 = vmatprep.subr.bf16.mxu0 0
    %304 = vmatpush1.bf16.msra.mxu0 0
    %305 = vmatprep.subr.bf16.mxu0 0
    %306 = vmatpush1.bf16.msra.mxu0 0
    %307 = vmatprep.subr.bf16.mxu0 0
    %308 = vmatpush1.bf16.msra.mxu0 0
    %309 = vmatprep.subr.bf16.mxu0 0
    %310 = vmatpush1.bf16.msra.mxu0 0
    %311 = vmatprep.subr.bf16.mxu0 0
    %312 = vmatpush1.bf16.msra.mxu0 0
    %313 = vmatprep.subr.bf16.mxu0 0
    %314 = vmatpush1.bf16.msra.mxu0 0
    %315 = vmatprep.subr.bf16.mxu0 0
    %316 = vmatpush1.bf16.msra.mxu0 0
    %317 = vmatprep.subr.bf16.mxu0 0
    %318 = vmatpush1.bf16.msra.mxu0 0
    %319 = vmatprep.mubr.bf16.mxu0 0
    %320 = vmatmul.mubr.bf16.gmra.mrb[0].mxu0 %v285
    %v321 = vpop.f32.mrb[0].mxu0
    %v322 = vadd.f32 0.0, %v321
    %v323 = vpop.f32.mrb[0].mxu0
    %v324 = vpop.f32.mrb[0].mxu0
    %v325 = vpop.f32.mrb[0].mxu0
    %326 = vdwg.mxu0
    %v327 = vmul.f32 %v322, 0.25
    %329 = vrot.lane.b32.xlu0 %v228, 8
    %v330 = vpop.permute.xlu0 %329
    %333 = vrot.lane.b32.xlu0 %v277, 16
    %v334 = vpop.permute.xlu0 %333
    %337 = vrot.lane.b32.xlu0 %v327, 24
    %v338 = vpop.permute.xlu0 %337
    %vm340 = vcmask 64512
    %v341 = vsel %vm340, %v181, %v330
    %v342 = vsel %vm137, %v341, %v334
    %vm343 = vcmask 195584
    %v344 = vsel %vm343, %v342, %v338
    %v345 = vsel %vm49, %v344, -inf
    %v346 = vrot.slane %v345, 4
    %v347 = vmax.f32 %v345, %v346
    %v348 = vrot.slane %v347, 2
    %v349 = vmax.f32 %v347, %v348
    %v350 = vrot.slane %v349, 1
    %v351 = vmax.f32 %v349, %v350
    %v352 = vsub.f32 %v344, %v351
    %v353 = vmul.f32 %v352, 1.442695
    %v354 = vpow.pop %v353
    %v355 = vsel %vm49, %v354, 0.0
    %v356 = vrot.slane %v355, 4
    %v357 = vadd.f32 %v355, %v356
    %v358 = vrot.slane %v357, 2
    %v359 = vadd.f32 %v357, %v358
    %v360 = vrot.slane %v359, 1
    %v361 = vadd.f32 %v359, %v360
    %v362 = vrcp.pop %v361
    %v363 = vmul.f32 %v354, %v362
    %v364 = vpack.c.bf16 %v363, %v363
    %365 = vrot.lane.b32.xlu0 %v134, 64
    %v366 = vpop.permute.xlu0 %365
    %v368 = vsel %vm340, %v364, 0
    %vm370 = vcmask 1043456
    %v372 = vsel %vm370, %v366, 0
    %374 = vmatprep.subr.bf16.mxu0 0
    %375 = vmatpush1.bf16.msra.mxu0 %v372
    %376 = vmatprep.subr.bf16.mxu0 0
    %377 = vmatpush1.bf16.msra.mxu0 0
    %378 = vmatprep.subr.bf16.mxu0 0
    %379 = vmatpush1.bf16.msra.mxu0 0
    %380 = vmatprep.subr.bf16.mxu0 0
    %381 = vmatpush1.bf16.msra.mxu0 0
    %382 = vmatprep.subr.bf16.mxu0 0
    %383 = vmatpush1.bf16.msra.mxu0 0
    %384 = vmatprep.subr.bf16.mxu0 0
    %385 = vmatpush1.bf16.msra.mxu0 0
    %386 = vmatprep.subr.bf16.mxu0 0
    %387 = vmatpush1.bf16.msra.mxu0 0
    %388 = vmatprep.subr.bf16.mxu0 0
    %389 = vmatpush1.bf16.msra.mxu0 0
    %390 = vmatprep.subr.bf16.mxu0 0
    %391 = vmatpush1.bf16.msra.mxu0 0
    %392 = vmatprep.subr.bf16.mxu0 0
    %393 = vmatpush1.bf16.msra.mxu0 0
    %394 = vmatprep.subr.bf16.mxu0 0
    %395 = vmatpush1.bf16.msra.mxu0 0
    %396 = vmatprep.subr.bf16.mxu0 0
    %397 = vmatpush1.bf16.msra.mxu0 0
    %398 = vmatprep.subr.bf16.mxu0 0
    %399 = vmatpush1.bf16.msra.mxu0 0
    %400 = vmatprep.subr.bf16.mxu0 0
    %401 = vmatpush1.bf16.msra.mxu0 0
    %402 = vmatprep.subr.bf16.mxu0 0
    %403 = vmatpush1.bf16.msra.mxu0 0
    %404 = vmatprep.subr.bf16.mxu0 0
    %405 = vmatpush1.bf16.msra.mxu0 0
    %406 = vmatprep.mubr.bf16.mxu0 0
    %407 = vmatmul.mubr.bf16.gmra.mrb[0].mxu0 %v368
    %v408 = vpop.f32.mrb[0].mxu0
    %v409 = vadd.f32 0.0, %v408
    %v410 = vpop.f32.mrb[0].mxu0
    %v411 = vpop.f32.mrb[0].mxu0
    %v412 = vpop.f32.mrb[0].mxu0
    %413 = vdwg.mxu0
    %415 = vrot.lane.b32.xlu0 %v364, 120
    %v416 = vpop.permute.xlu0 %415
    %417 = vrot.lane.b32.xlu0 %v134, 48
    %v418 = vpop.permute.xlu0 %417
    %v420 = vsel %vm340, %v416, 0
    %v423 = vsel %vm370, %v418, 0
    %425 = vmatprep.subr.bf16.mxu0 0
    %426 = vmatpush1.bf16.msra.mxu0 %v423
    %427 = vmatprep.subr.bf16.mxu0 0
    %428 = vmatpush1.bf16.msra.mxu0 0
    %429 = vmatprep.subr.bf16.mxu0 0
    %430 = vmatpush1.bf16.msra.mxu0 0
    %431 = vmatprep.subr.bf16.mxu0 0
    %432 = vmatpush1.bf16.msra.mxu0 0
    %433 = vmatprep.subr.bf16.mxu0 0
    %434 = vmatpush1.bf16.msra.mxu0 0
    %435 = vmatprep.subr.bf16.mxu0 0
    %436 = vmatpush1.bf16.msra.mxu0 0
    %437 = vmatprep.subr.bf16.mxu0 0
    %438 = vmatpush1.bf16.msra.mxu0 0
    %439 = vmatprep.subr.bf16.mxu0 0
    %440 = vmatpush1.bf16.msra.mxu0 0
    %441 = vmatprep.subr.bf16.mxu0 0
    %442 = vmatpush1.bf16.msra.mxu0 0
    %443 = vmatprep.subr.bf16.mxu0 0
    %444 = vmatpush1.bf16.msra.mxu0 0
    %445 = vmatprep.subr.bf16.mxu0 0
    %446 = vmatpush1.bf16.msra.mxu0 0
    %447 = vmatprep.subr.bf16.mxu0 0
    %448 = vmatpush1.bf16.msra.mxu0 0
    %449 = vmatprep.subr.bf16.mxu0 0
    %450 = vmatpush1.bf16.msra.mxu0 0
    %451 = vmatprep.subr.bf16.mxu0 0
    %452 = vmatpush1.bf16.msra.mxu0 0
    %453 = vmatprep.subr.bf16.mxu0 0
    %454 = vmatpush1.bf16.msra.mxu0 0
    %455 = vmatprep.subr.bf16.mxu0 0
    %456 = vmatpush1.bf16.msra.mxu0 0
    %457 = vmatprep.mubr.bf16.mxu0 0
    %458 = vmatmul.mubr.bf16.gmra.mrb[0].mxu0 %v420
    %v459 = vpop.f32.mrb[0].mxu0
    %v460 = vadd.f32 0.0, %v459
    %v461 = vpop.f32.mrb[0].mxu0
    %v462 = vpop.f32.mrb[0].mxu0
    %v463 = vpop.f32.mrb[0].mxu0
    %464 = vdwg.mxu0
    %466 = vrot.lane.b32.xlu0 %v460, 16
    %v467 = vpop.permute.xlu0 %466
    %v469 = vsel %vm137, %v409, %v467
    %v470 = vpack.c.bf16 %v469, %v469
    %v471 = vld [vmem:[%s3] sm:$0xf]
    %v472 = vld [vmem:[%s3 + $0x4] sm:$0xf]
    %v473 = vld [vmem:[%s3 + $0x8] sm:$0xf]
    %v474 = vld [vmem:[%s3 + $0xc] sm:$0xf]
    %v479 = vunpack.c.l.b16 %v471
    %v480 = vunpack.c.l.b16 %v472
    %v481 = vunpack.c.l.b16 %v473
    %v482 = vunpack.c.l.b16 %v474
    %v483 = vpack.c.b16 %v480, %v479
    %v484 = vpack.c.b16 %v482, %v481
    %v488 = vsel %vm49, %v470, 0
    %490 = vmatprep.subr.bf16.mxu0 0
    %491 = vmatpush1.bf16.msra.mxu0 %v483
    %492 = vmatprep.subr.bf16.mxu0 0
    %493 = vmatpush1.bf16.msra.mxu0 %v484
    %494 = vmatprep.subr.bf16.mxu0 0
    %495 = vmatpush1.bf16.msra.mxu0 0
    %496 = vmatprep.subr.bf16.mxu0 0
    %497 = vmatpush1.bf16.msra.mxu0 0
    %498 = vmatprep.subr.bf16.mxu0 0
    %499 = vmatpush1.bf16.msra.mxu0 0
    %500 = vmatprep.subr.bf16.mxu0 0
    %501 = vmatpush1.bf16.msra.mxu0 0
    %502 = vmatprep.subr.bf16.mxu0 0
    %503 = vmatpush1.bf16.msra.mxu0 0
    %504 = vmatprep.subr.bf16.mxu0 0
    %505 = vmatpush1.bf16.msra.mxu0 0
    %506 = vmatprep.subr.bf16.mxu0 0
    %507 = vmatpush1.bf16.msra.mxu0 0
    %508 = vmatprep.subr.bf16.mxu0 0
    %509 = vmatpush1.bf16.msra.mxu0 0
    %510 = vmatprep.subr.bf16.mxu0 0
    %511 = vmatpush1.bf16.msra.mxu0 0
    %512 = vmatprep.subr.bf16.mxu0 0
    %513 = vmatpush1.bf16.msra.mxu0 0
    %514 = vmatprep.subr.bf16.mxu0 0
    %515 = vmatpush1.bf16.msra.mxu0 0
    %516 = vmatprep.subr.bf16.mxu0 0
    %517 = vmatpush1.bf16.msra.mxu0 0
    %518 = vmatprep.subr.bf16.mxu0 0
    %519 = vmatpush1.bf16.msra.mxu0 0
    %520 = vmatprep.subr.bf16.mxu0 0
    %521 = vmatpush1.bf16.msra.mxu0 0
    %522 = vmatprep.mubr.bf16.mxu0 0
    %523 = vmatmul.mubr.bf16.gmra.mrb[0].mxu0 %v488
    %v524 = vpop.f32.mrb[0].mxu0
    %v525 = vadd.f32 0.0, %v524
    %v526 = vpop.f32.mrb[0].mxu0
    %v527 = vpop.f32.mrb[0].mxu0
    %v528 = vpop.f32.mrb[0].mxu0
    %529 = vdwg.mxu0
    %530 = vst.msk [vmem:[#allocation2] sm:$0xff] %vm49, %v525
    %531 = vrot.lane.b32.xlu0 %v364, 112
    %v532 = vpop.permute.xlu0 %531
    %533 = vrot.lane.b32.xlu0 %v229, 64
    %v534 = vpop.permute.xlu0 %533
    %v536 = vsel %vm340, %v532, 0
    %v539 = vsel %vm370, %v534, 0
    %541 = vmatprep.subr.bf16.mxu0 0
    %542 = vmatpush1.bf16.msra.mxu0 %v539
    %543 = vmatprep.subr.bf16.mxu0 0
    %544 = vmatpush1.bf16.msra.mxu0 0
    %545 = vmatprep.subr.bf16.mxu0 0
    %546 = vmatpush1.bf16.msra.mxu0 0
    %547 = vmatprep.subr.bf16.mxu0 0
    %548 = vmatpush1.bf16.msra.mxu0 0
    %549 = vmatprep.subr.bf16.mxu0 0
    %550 = vmatpush1.bf16.msra.mxu0 0
    %551 = vmatprep.subr.bf16.mxu0 0
    %552 = vmatpush1.bf16.msra.mxu0 0
    %553 = vmatprep.subr.bf16.mxu0 0
    %554 = vmatpush1.bf16.msra.mxu0 0
    %555 = vmatprep.subr.bf16.mxu0 0
    %556 = vmatpush1.bf16.msra.mxu0 0
    %557 = vmatprep.subr.bf16.mxu0 0
    %558 = vmatpush1.bf16.msra.mxu0 0
    %559 = vmatprep.subr.bf16.mxu0 0
    %560 = vmatpush1.bf16.msra.mxu0 0
    %561 = vmatprep.subr.bf16.mxu0 0
    %562 = vmatpush1.bf16.msra.mxu0 0
    %563 = vmatprep.subr.bf16.mxu0 0
    %564 = vmatpush1.bf16.msra.mxu0 0
    %565 = vmatprep.subr.bf16.mxu0 0
    %566 = vmatpush1.bf16.msra.mxu0 0
    %567 = vmatprep.subr.bf16.mxu0 0
    %568 = vmatpush1.bf16.msra.mxu0 0
    %569 = vmatprep.subr.bf16.mxu0 0
    %570 = vmatpush1.bf16.msra.mxu0 0
    %571 = vmatprep.subr.bf16.mxu0 0
    %572 = vmatpush1.bf16.msra.mxu0 0
    %573 = vmatprep.mubr.bf16.mxu0 0
    %574 = vmatmul.mubr.bf16.gmra.mrb[0].mxu0 %v536
    %v575 = vpop.f32.mrb[0].mxu0
    %v576 = vadd.f32 0.0, %v575
    %v577 = vpop.f32.mrb[0].mxu0
    %v578 = vpop.f32.mrb[0].mxu0
    %v579 = vpop.f32.mrb[0].mxu0
    %580 = vdwg.mxu0
    %581 = vrot.lane.b32.xlu0 %v364, 104
    %v582 = vpop.permute.xlu0 %581
    %583 = vrot.lane.b32.xlu0 %v229, 48
    %v584 = vpop.permute.xlu0 %583
    %v586 = vsel %vm340, %v582, 0
    %v589 = vsel %vm370, %v584, 0
    %591 = vmatprep.subr.bf16.mxu0 0
    %592 = vmatpush1.bf16.msra.mxu0 %v589
    %593 = vmatprep.subr.bf16.mxu0 0
    %594 = vmatpush1.bf16.msra.mxu0 0
    %595 = vmatprep.subr.bf16.mxu0 0
    %596 = vmatpush1.bf16.msra.mxu0 0
    %597 = vmatprep.subr.bf16.mxu0 0
    %598 = vmatpush1.bf16.msra.mxu0 0
    %599 = vmatprep.subr.bf16.mxu0 0
    %600 = vmatpush1.bf16.msra.mxu0 0
    %601 = vmatprep.subr.bf16.mxu0 0
    %602 = vmatpush1.bf16.msra.mxu0 0
    %603 = vmatprep.subr.bf16.mxu0 0
    %604 = vmatpush1.bf16.msra.mxu0 0
    %605 = vmatprep.subr.bf16.mxu0 0
    %606 = vmatpush1.bf16.msra.mxu0 0
    %607 = vmatprep.subr.bf16.mxu0 0
    %608 = vmatpush1.bf16.msra.mxu0 0
    %609 = vmatprep.subr.bf16.mxu0 0
    %610 = vmatpush1.bf16.msra.mxu0 0
    %611 = vmatprep.subr.bf16.mxu0 0
    %612 = vmatpush1.bf16.msra.mxu0 0
    %613 = vmatprep.subr.bf16.mxu0 0
    %614 = vmatpush1.bf16.msra.mxu0 0
    %615 = vmatprep.subr.bf16.mxu0 0
    %616 = vmatpush1.bf16.msra.mxu0 0
    %617 = vmatprep.subr.bf16.mxu0 0
    %618 = vmatpush1.bf16.msra.mxu0 0
    %619 = vmatprep.subr.bf16.mxu0 0
    %620 = vmatpush1.bf16.msra.mxu0 0
    %621 = vmatprep.subr.bf16.mxu0 0
    %622 = vmatpush1.bf16.msra.mxu0 0
    %623 = vmatprep.mubr.bf16.mxu0 0
    %624 = vmatmul.mubr.bf16.gmra.mrb[0].mxu0 %v586
    %v625 = vpop.f32.mrb[0].mxu0
    %v626 = vadd.f32 0.0, %v625
    %v627 = vpop.f32.mrb[0].mxu0
    %v628 = vpop.f32.mrb[0].mxu0
    %v629 = vpop.f32.mrb[0].mxu0
    %630 = vdwg.mxu0
    %632 = vrot.lane.b32.xlu0 %v626, 16
    %v633 = vpop.permute.xlu0 %632
    %v635 = vsel %vm137, %v576, %v633
    %v636 = vpack.c.bf16 %v635, %v635
    %v637 = vld [vmem:[%s3] sm:$0xf]
    %v638 = vld [vmem:[%s3 + $0x4] sm:$0xf]
    %v639 = vld [vmem:[%s3 + $0x8] sm:$0xf]
    %v640 = vld [vmem:[%s3 + $0xc] sm:$0xf]
    %v645 = vunpack.c.l.b16 %v637
    %v646 = vunpack.c.l.b16 %v638
    %v647 = vunpack.c.l.b16 %v639
    %v648 = vunpack.c.l.b16 %v640
    %v649 = vpack.c.b16 %v646, %v645
    %v650 = vpack.c.b16 %v648, %v647
    %v654 = vsel %vm49, %v636, 0
    %656 = vmatprep.subr.bf16.mxu0 0
    %657 = vmatpush1.bf16.msra.mxu0 %v649
    %658 = vmatprep.subr.bf16.mxu0 0
    %659 = vmatpush1.bf16.msra.mxu0 %v650
    %660 = vmatprep.subr.bf16.mxu0 0
    %661 = vmatpush1.bf16.msra.mxu0 0
    %662 = vmatprep.subr.bf16.mxu0 0
    %663 = vmatpush1.bf16.msra.mxu0 0
    %664 = vmatprep.subr.bf16.mxu0 0
    %665 = vmatpush1.bf16.msra.mxu0 0
    %666 = vmatprep.subr.bf16.mxu0 0
    %667 = vmatpush1.bf16.msra.mxu0 0
    %668 = vmatprep.subr.bf16.mxu0 0
    %669 = vmatpush1.bf16.msra.mxu0 0
    %670 = vmatprep.subr.bf16.mxu0 0
    %671 = vmatpush1.bf16.msra.mxu0 0
    %672 = vmatprep.subr.bf16.mxu0 0
    %673 = vmatpush1.bf16.msra.mxu0 0
    %674 = vmatprep.subr.bf16.mxu0 0
    %675 = vmatpush1.bf16.msra.mxu0 0
    %676 = vmatprep.subr.bf16.mxu0 0
    %677 = vmatpush1.bf16.msra.mxu0 0
    %678 = vmatprep.subr.bf16.mxu0 0
    %679 = vmatpush1.bf16.msra.mxu0 0
    %680 = vmatprep.subr.bf16.mxu0 0
    %681 = vmatpush1.bf16.msra.mxu0 0
    %682 = vmatprep.subr.bf16.mxu0 0
    %683 = vmatpush1.bf16.msra.mxu0 0
    %684 = vmatprep.subr.bf16.mxu0 0
    %685 = vmatpush1.bf16.msra.mxu0 0
    %686 = vmatprep.subr.bf16.mxu0 0
    %687 = vmatpush1.bf16.msra.mxu0 0
    %688 = vmatprep.mubr.bf16.mxu0 0
    %689 = vmatmul.mubr.bf16.gmra.mrb[0].mxu0 %v654
    %v690 = vpop.f32.mrb[0].mxu0
    %v691 = vadd.f32 0.0, %v690
    %v692 = vpop.f32.mrb[0].mxu0
    %v693 = vpop.f32.mrb[0].mxu0
    %v694 = vpop.f32.mrb[0].mxu0
    %695 = vdwg.mxu0
    %696 = vst.msk [vmem:[#allocation2 + $0x8] sm:$0xff] %vm49, %v691
    // Predicated region
    $region18: #{mhsa_forward.1} parent=1 // pred_check
      _
    $region19: #{mhsa_forward.1} parent=1 // pred_check_branch
      %698 = sbr.rel (0) target = $region21
    $region20: #{mhsa_forward.1} parent=1 // pred_region
      %s700 = ssub.s32 256, 256
      %701 = vsyncadd [#allocation3], %s700
      %s702 = sshll.u32 [#allocation2], 4
      %s703 = int_to_ptr.vmem [resolvable:$true] %s702
      %708 = dma.vmem_to_hbm [thread:$0]  %s703, 256, %s4, [#allocation3], 128, 128, 8
    $region21: #{mhsa_forward.1} parent=1 // pred_fallthru
      _
    // Predicated region
    $region22: #{mhsa_forward.1} parent=1 // pred_check
      _
    $region23: #{mhsa_forward.1} parent=1 // pred_check_branch
      %710 = sbr.rel (0) target = $region25
    $region24: #{mhsa_forward.1} parent=1 // pred_region
      %711 = dma.done [#allocation3], 256
    $region25: #{mhsa_forward.1} parent=1 // pred_fallthru
      _
    %712 = vsyncpa [#allocation3], 1

</llo_original>
